<compile_context>
chip_gen: v5e
topology: v5e:2x2
jax: 0.10.0
libtpu: 0.0.40
codegen_flags: <defaults>
</compile_context>

<pallas_src>
import jax
import jax.numpy as jnp
from jax.experimental import pallas as pl
from jax.experimental.pallas import tpu as pltpu


def _graph_res_block_kernel(x_ref, w1_ref, b1_ref, w2_ref, b2_ref, o_ref):
    """Fused GraphResBlock on flat (batch_tile, VDp) activations.

    x_ref : (TB, VDp)   input activations (residual source)
    w?_ref: (VDp, VDp)  fused (per-vertex Linear + BN + adjacency) weights
    b?_ref: (1, VDp)    fused biases (f32)
    o_ref : (TB, VDp)   output
    """
    x = x_ref[...]                                     # (TB, VDp)
    xc = x.astype(w1_ref.dtype)                        # bf16 operands -> MXU peak

    # GraphConvBlock 1  (fused fc+bn+adj, then relu), f32 accumulation
    h = jnp.dot(xc, w1_ref[...], preferred_element_type=jnp.float32) + b1_ref[...]
    h = jnp.maximum(h, 0.0)

    # GraphConvBlock 2
    g = jnp.dot(h.astype(w2_ref.dtype), w2_ref[...],
                preferred_element_type=jnp.float32) + b2_ref[...]
    g = jnp.maximum(g, 0.0)

    # residual (in f32, then cast to output dtype)
    o_ref[...] = (g + x.astype(jnp.float32)).astype(o_ref.dtype)


def _round_up(x, m):
    return ((x + m - 1) // m) * m


def _choose_batch_tile(batch, block_b):
    """Large sublane-aligned tiles; keep grid >= 2 when possible (v7x megacore)."""
    if batch > block_b:
        return block_b                      # block_b is a multiple of 8 -> grid >= 2
    if batch >= 16:
        # split into ~2 tiles, rounded up to the 8-sublane granule
        return min(batch, _round_up(pl.cdiv(batch, 2), 8))
    return batch                            # tiny batch: one full-extent tile


def _vmem_limit_bytes():
    """Generation-aware VMEM budget: ~75% of physical, capped at 100 MiB."""
    try:
        cap = int(pltpu.get_tpu_info().vmem_capacity_bytes)
    except Exception:
        cap = 64 * 1024 * 1024              # conservative (v7x-sized) default
    return max(32 * 1024 * 1024, min(cap * 3 // 4, 100 * 1024 * 1024))


def _fold_graph_conv_params(adj, W, b, gamma, beta, mean, var, eps=1e-5,
                            compute_dtype=jnp.bfloat16):
    """Fold per-vertex Linear + BatchNorm1d(eval) + adjacency mix into one matmul.

    adj   : (V, V)
    W     : (V, E, D)  per-vertex torch Linear weight (out_features, in_features)
    b     : (V, E)     per-vertex Linear bias
    gamma, beta, mean, var : (V, E)  BatchNorm1d params / running stats
    Returns W_fused (V*D, V*E) in compute_dtype, b_fused (1, V*E) in f32 so that
        GCB(x)[b, u, e] = relu( (x.reshape(B, V*D) @ W_fused + b_fused)[b, u*E+e] )
    """
    V, E, D = W.shape
    scale = gamma / jnp.sqrt(var + eps)                       # (V, E)
    shift = beta - mean * scale                               # (V, E)
    Wp = jnp.transpose(W, (0, 2, 1)) * scale[:, None, :]      # (V, D, E): BN folded
    bp = b * scale + shift                                    # (V, E)
    # fold adjacency:  W_fused[(v,d),(u,e)] = adj[u,v] * Wp[v,d,e]
    W_fused = jnp.einsum('uv,vde->vdue', adj, Wp).reshape(V * D, V * E)
    b_fused = (adj @ bp).reshape(1, V * E)                    # sum_v adj[u,v] * bp[v,e]
    return W_fused.astype(compute_dtype), b_fused.astype(jnp.float32)


def graph_res_block_forward(feat, adj, params1, params2, *, eps=1e-5,
                            compute_dtype=jnp.bfloat16, activation_dtype=None,
                            block_b=512):
    """GraphResBlock forward.

    feat    : (B, V, D)
    adj     : (V, V)
    params? : (W (V,D,D), b (V,D), gamma, beta, running_mean, running_var) per block
    returns : (B, V, D) in activation_dtype (defaults to feat.dtype)
    """
    B, V, D = feat.shape
    VD = V * D
    VDp = _round_up(VD, 128)                # lane-dense activations / unmasked stores

    # glue (plain JAX, outside the kernel): fold fc+bn+adj into dense matmuls
    W1, b1 = _fold_graph_conv_params(adj, *params1, eps=eps, compute_dtype=compute_dtype)
    W2, b2 = _fold_graph_conv_params(adj, *params2, eps=eps, compute_dtype=compute_dtype)

    act_dtype = feat.dtype if activation_dtype is None else activation_dtype
    x_flat = feat.reshape(B, VD).astype(act_dtype)

    if VDp != VD:
        pad = VDp - VD
        W1 = jnp.pad(W1, ((0, pad), (0, pad)))
        W2 = jnp.pad(W2, ((0, pad), (0, pad)))
        b1 = jnp.pad(b1, ((0, 0), (0, pad)))
        b2 = jnp.pad(b2, ((0, 0), (0, pad)))
        x_flat = jnp.pad(x_flat, ((0, 0), (0, pad)))

    TB = _choose_batch_tile(B, block_b)
    grid = (pl.cdiv(B, TB),)

    def _build(single_buffer_weights):
        # grid-invariant weights/biases: no point double-buffering them
        w_kwargs = dict(pipeline_mode=pl.Buffered(1)) if single_buffer_weights else {}
        return pl.pallas_call(
            _graph_res_block_kernel,
            out_shape=jax.ShapeDtypeStruct((B, VDp), act_dtype),
            grid_spec=pltpu.PrefetchScalarGridSpec(
                num_scalar_prefetch=0,
                grid=grid,
                in_specs=[
                    pl.BlockSpec((TB, VDp), lambda i: (i, 0)),              # activations
                    pl.BlockSpec((VDp, VDp), lambda i: (0, 0), **w_kwargs),  # W1 resident
                    pl.BlockSpec((1, VDp), lambda i: (0, 0), **w_kwargs),    # b1
                    pl.BlockSpec((VDp, VDp), lambda i: (0, 0), **w_kwargs),  # W2 resident
                    pl.BlockSpec((1, VDp), lambda i: (0, 0), **w_kwargs),    # b2
                ],
                out_specs=pl.BlockSpec((TB, VDp), lambda i: (i, 0)),
            ),
            compiler_params=pltpu.CompilerParams(
                # batch tiles are independent -> megacore sharding on v7x
                dimension_semantics=("parallel",),
                vmem_limit_bytes=_vmem_limit_bytes(),
            ),
        )

    try:
        out = _build(True)(x_flat, W1, b1, W2, b2)
    except Exception:
        # fallback for jax versions that reject single-buffered resident inputs
        out = _build(False)(x_flat, W1, b1, W2, b2)

    return out[:, :VD].reshape(B, V, D)


if __name__ == "__main__":
    # GraphResBlock(adj, dim=32) with vertex_num=8, batch=2
    B, V, D = 2, 8, 32
    key = jax.random.PRNGKey(0)
    keys = jax.random.split(key, 8)

    # deterministic "mesh-like" adjacency (row-normalized, with self loops)
    adj_raw = (jax.random.uniform(keys[0], (V, V)) > 0.5).astype(jnp.float32)
    adj = adj_raw + adj_raw.T + jnp.eye(V, dtype=jnp.float32)
    adj = adj / jnp.sum(adj, axis=1, keepdims=True)

    def make_block_params(k):
        ks = jax.random.split(k, 6)
        W = 0.2 * jax.random.normal(ks[0], (V, D, D), jnp.float32)   # (vertex, out, in)
        b = 0.1 * jax.random.normal(ks[1], (V, D), jnp.float32)
        gamma = 1.0 + 0.1 * jax.random.normal(ks[2], (V, D), jnp.float32)
        beta = 0.1 * jax.random.normal(ks[3], (V, D), jnp.float32)
        mean = 0.1 * jax.random.normal(ks[4], (V, D), jnp.float32)
        var = jnp.abs(1.0 + 0.1 * jax.random.normal(ks[5], (V, D), jnp.float32))
        return (W, b, gamma, beta, mean, var)

    p1 = make_block_params(keys[1])
    p2 = make_block_params(keys[2])
    feat = jax.random.normal(keys[3], (B, V, D), jnp.float32)

    # pure-JAX reference implementing the PyTorch module directly (eval-mode BN)
    def gcb_ref(x, adj_m, W, b, gamma, beta, mean, var, eps=1e-5):
        y = jnp.einsum('bvd,ved->bve', x, W) + b[None]                       # per-vertex Linear
        y = (y - mean[None]) / jnp.sqrt(var[None] + eps) * gamma[None] + beta[None]  # BN (eval)
        y = jnp.einsum('uv,bve->bue', adj_m, y)                              # bmm(adj, feat)
        return jax.nn.relu(y)

    ref = gcb_ref(feat, adj, *p1)
    ref = gcb_ref(ref, adj, *p2) + feat

    # 1) default path: bf16 fused weights (MXU-friendly), f32 accumulation
    out_bf16 = graph_res_block_forward(feat, adj, p1, p2)
    out_bf16 = jax.block_until_ready(out_bf16)
    assert out_bf16.shape == ref.shape, (out_bf16.shape, ref.shape)
    err_bf16 = float(jnp.max(jnp.abs(out_bf16 - ref)))
    assert jnp.allclose(out_bf16, ref, atol=5e-2, rtol=5e-2), err_bf16

    # 2) exact path: f32 fused weights
    out_f32 = graph_res_block_forward(feat, adj, p1, p2, compute_dtype=jnp.float32)
    out_f32 = jax.block_until_ready(out_f32)
    err_f32 = float(jnp.max(jnp.abs(out_f32 - ref)))
    assert jnp.allclose(out_f32, ref, atol=1e-4, rtol=1e-4), err_f32

    print("KERNEL_OK")
</pallas_src>

<mosaic_0001>
module attributes {stable_mosaic.version = 11 : i64} {
  func.func @_graph_res_block_kernel(%arg0: i32, %arg1: memref<2x256xf32, #tpu.memory_space<vmem>>, %arg2: memref<256x256xbf16, #tpu.memory_space<vmem>>, %arg3: memref<1x256xf32, #tpu.memory_space<vmem>>, %arg4: memref<256x256xbf16, #tpu.memory_space<vmem>>, %arg5: memref<1x256xf32, #tpu.memory_space<vmem>>, %arg6: memref<2x256xf32, #tpu.memory_space<vmem>>) attributes {dimension_semantics = [#tpu.dimension_semantics<parallel>], iteration_bounds = array<i64: 1>, scalar_prefetch = 0 : i64, scratch_operands = 0 : i64, tpu.core_type = #tpu.core_type<tc>, window_params = [{transform_indices = @transform_0, window_bounds = array<i64: 2, 256>}, {pipeline_mode = #tpu.pipeline_mode<synchronous>, transform_indices = @transform_1, window_bounds = array<i64: 256, 256>}, {pipeline_mode = #tpu.pipeline_mode<synchronous>, transform_indices = @transform_2, window_bounds = array<i64: 1, 256>}, {pipeline_mode = #tpu.pipeline_mode<synchronous>, transform_indices = @transform_3, window_bounds = array<i64: 256, 256>}, {pipeline_mode = #tpu.pipeline_mode<synchronous>, transform_indices = @transform_4, window_bounds = array<i64: 1, 256>}, {transform_indices = @transform_5, window_bounds = array<i64: 2, 256>}]} {
    %c0 = arith.constant 0 : index
    %c0_0 = arith.constant 0 : index
    %0 = vector.load %arg1[%c0, %c0_0] : memref<2x256xf32, #tpu.memory_space<vmem>>, vector<2x256xf32>
    %1 = arith.truncf %0 : vector<2x256xf32> to vector<2x256xbf16>
    %c0_1 = arith.constant 0 : index
    %c0_2 = arith.constant 0 : index
    %2 = vector.load %arg2[%c0_1, %c0_2] : memref<256x256xbf16, #tpu.memory_space<vmem>>, vector<256x256xbf16>
    %cst = arith.constant dense<0.000000e+00> : vector<2x256xf32>
    %3 = tpu.matmul %1, %2, %cst {dimension_numbers = #tpu.dot_dimension_numbers<[1], [0], [0], [1], [0, 0, 1, 1], [], []>} : vector<2x256xbf16>, vector<256x256xbf16>, vector<2x256xf32> -> vector<2x256xf32>
    %c0_3 = arith.constant 0 : index
    %c0_4 = arith.constant 0 : index
    %4 = vector.load %arg3[%c0_3, %c0_4] : memref<1x256xf32, #tpu.memory_space<vmem>>, vector<1x256xf32>
    %5 = vector.broadcast %4 : vector<1x256xf32> to vector<2x256xf32>
    %6 = arith.addf %3, %5 : vector<2x256xf32>
    %cst_5 = arith.constant 0.000000e+00 : f32
    %7 = vector.broadcast %cst_5 : f32 to vector<2x256xf32>
    %8 = arith.maximumf %6, %7 : vector<2x256xf32>
    %9 = arith.truncf %8 : vector<2x256xf32> to vector<2x256xbf16>
    %c0_6 = arith.constant 0 : index
    %c0_7 = arith.constant 0 : index
    %10 = vector.load %arg4[%c0_6, %c0_7] : memref<256x256xbf16, #tpu.memory_space<vmem>>, vector<256x256xbf16>
    %cst_8 = arith.constant dense<0.000000e+00> : vector<2x256xf32>
    %11 = tpu.matmul %9, %10, %cst_8 {dimension_numbers = #tpu.dot_dimension_numbers<[1], [0], [0], [1], [0, 0, 1, 1], [], []>} : vector<2x256xbf16>, vector<256x256xbf16>, vector<2x256xf32> -> vector<2x256xf32>
    %c0_9 = arith.constant 0 : index
    %c0_10 = arith.constant 0 : index
    %12 = vector.load %arg5[%c0_9, %c0_10] : memref<1x256xf32, #tpu.memory_space<vmem>>, vector<1x256xf32>
    %13 = vector.broadcast %12 : vector<1x256xf32> to vector<2x256xf32>
    %14 = arith.addf %11, %13 : vector<2x256xf32>
    %cst_11 = arith.constant 0.000000e+00 : f32
    %15 = vector.broadcast %cst_11 : f32 to vector<2x256xf32>
    %16 = arith.maximumf %14, %15 : vector<2x256xf32>
    %17 = arith.addf %16, %0 : vector<2x256xf32>
    %c0_12 = arith.constant 0 : index
    %c0_13 = arith.constant 0 : index
    %18 = vector.load %arg6[%c0_12, %c0_13] : memref<2x256xf32, #tpu.memory_space<vmem>>, vector<2x256xf32>
    tpu.vector_store %arg6[%c0_12, %c0_13], %17 {strides = array<i32>} : memref<2x256xf32, #tpu.memory_space<vmem>>, vector<2x256xf32>,
    return
  }
  func.func @transform_0(%arg0: i32) -> (i32, i32) {
    %c0_i32 = arith.constant 0 : i32
    %c0_i32_0 = arith.constant 0 : i32
    return %arg0, %c0_i32 : i32, i32
  }
  func.func @transform_1(%arg0: i32) -> (i32, i32) {
    %c0_i32 = arith.constant 0 : i32
    %c0_i32_0 = arith.constant 0 : i32
    %c0_i32_1 = arith.constant 0 : i32
    return %c0_i32, %c0_i32_0 : i32, i32
  }
  func.func @transform_2(%arg0: i32) -> (i32, i32) {
    %c0_i32 = arith.constant 0 : i32
    %c0_i32_0 = arith.constant 0 : i32
    %c0_i32_1 = arith.constant 0 : i32
    return %c0_i32, %c0_i32_0 : i32, i32
  }
  func.func @transform_3(%arg0: i32) -> (i32, i32) {
    %c0_i32 = arith.constant 0 : i32
    %c0_i32_0 = arith.constant 0 : i32
    %c0_i32_1 = arith.constant 0 : i32
    return %c0_i32, %c0_i32_0 : i32, i32
  }
  func.func @transform_4(%arg0: i32) -> (i32, i32) {
    %c0_i32 = arith.constant 0 : i32
    %c0_i32_0 = arith.constant 0 : i32
    %c0_i32_1 = arith.constant 0 : i32
    return %c0_i32, %c0_i32_0 : i32, i32
  }
  func.func @transform_5(%arg0: i32) -> (i32, i32) {
    %c0_i32 = arith.constant 0 : i32
    %c0_i32_0 = arith.constant 0 : i32
    return %arg0, %c0_i32 : i32, i32
  }
}

module attributes {stable_mosaic.version = 11 : i64} {
  func.func @_graph_res_block_kernel(%arg0: i32, %arg1: memref<2x256xf32, #tpu.memory_space<vmem>>, %arg2: memref<256x256xbf16, #tpu.memory_space<vmem>>, %arg3: memref<1x256xf32, #tpu.memory_space<vmem>>, %arg4: memref<256x256xbf16, #tpu.memory_space<vmem>>, %arg5: memref<1x256xf32, #tpu.memory_space<vmem>>, %arg6: memref<2x256xf32, #tpu.memory_space<vmem>>) attributes {dimension_semantics = [#tpu.dimension_semantics<parallel>], iteration_bounds = array<i64: 1>, scalar_prefetch = 0 : i64, scratch_operands = 0 : i64, tpu.core_type = #tpu.core_type<tc>, window_params = [{transform_indices = @transform_0, window_bounds = array<i64: 2, 256>}, {pipeline_mode = #tpu.pipeline_mode<synchronous>, transform_indices = @transform_1, window_bounds = array<i64: 256, 256>}, {pipeline_mode = #tpu.pipeline_mode<synchronous>, transform_indices = @transform_2, window_bounds = array<i64: 1, 256>}, {pipeline_mode = #tpu.pipeline_mode<synchronous>, transform_indices = @transform_3, window_bounds = array<i64: 256, 256>}, {pipeline_mode = #tpu.pipeline_mode<synchronous>, transform_indices = @transform_4, window_bounds = array<i64: 1, 256>}, {transform_indices = @transform_5, window_bounds = array<i64: 2, 256>}]} {
    %c0 = arith.constant 0 : index
    %c0_0 = arith.constant 0 : index
    %0 = vector.load %arg1[%c0, %c0_0] : memref<2x256xf32, #tpu.memory_space<vmem>>, vector<2x256xf32>
    %1 = arith.truncf %0 : vector<2x256xf32> to vector<2x256xbf16>
    %c0_1 = arith.constant 0 : index
    %c0_2 = arith.constant 0 : index
    %2 = vector.load %arg2[%c0_1, %c0_2] : memref<256x256xbf16, #tpu.memory_space<vmem>>, vector<256x256xbf16>
    %cst = arith.constant dense<0.000000e+00> : vector<2x256xf32>
    %3 = tpu.matmul %1, %2, %cst {dimension_numbers = #tpu.dot_dimension_numbers<[1], [0], [0], [1], [0, 0, 1, 1], [], []>} : vector<2x256xbf16>, vector<256x256xbf16>, vector<2x256xf32> -> vector<2x256xf32>
    %c0_3 = arith.constant 0 : index
    %c0_4 = arith.constant 0 : index
    %4 = vector.load %arg3[%c0_3, %c0_4] : memref<1x256xf32, #tpu.memory_space<vmem>>, vector<1x256xf32>
    %5 = vector.broadcast %4 : vector<1x256xf32> to vector<2x256xf32>
    %6 = arith.addf %3, %5 : vector<2x256xf32>
    %cst_5 = arith.constant 0.000000e+00 : f32
    %7 = vector.broadcast %cst_5 : f32 to vector<2x256xf32>
    %8 = arith.maximumf %6, %7 : vector<2x256xf32>
    %9 = arith.truncf %8 : vector<2x256xf32> to vector<2x256xbf16>
    %c0_6 = arith.constant 0 : index
    %c0_7 = arith.constant 0 : index
    %10 = vector.load %arg4[%c0_6, %c0_7] : memref<256x256xbf16, #tpu.memory_space<vmem>>, vector<256x256xbf16>
    %cst_8 = arith.constant dense<0.000000e+00> : vector<2x256xf32>
    %11 = tpu.matmul %9, %10, %cst_8 {dimension_numbers = #tpu.dot_dimension_numbers<[1], [0], [0], [1], [0, 0, 1, 1], [], []>} : vector<2x256xbf16>, vector<256x256xbf16>, vector<2x256xf32> -> vector<2x256xf32>
    %c0_9 = arith.constant 0 : index
    %c0_10 = arith.constant 0 : index
    %12 = vector.load %arg5[%c0_9, %c0_10] : memref<1x256xf32, #tpu.memory_space<vmem>>, vector<1x256xf32>
    %13 = vector.broadcast %12 : vector<1x256xf32> to vector<2x256xf32>
    %14 = arith.addf %11, %13 : vector<2x256xf32>
    %cst_11 = arith.constant 0.000000e+00 : f32
    %15 = vector.broadcast %cst_11 : f32 to vector<2x256xf32>
    %16 = arith.maximumf %14, %15 : vector<2x256xf32>
    %17 = arith.addf %16, %0 : vector<2x256xf32>
    %c0_12 = arith.constant 0 : index
    %c0_13 = arith.constant 0 : index
    %18 = vector.load %arg6[%c0_12, %c0_13] : memref<2x256xf32, #tpu.memory_space<vmem>>, vector<2x256xf32>
    tpu.vector_store %arg6[%c0_12, %c0_13], %17 {strides = array<i32>} : memref<2x256xf32, #tpu.memory_space<vmem>>, vector<2x256xf32>,
    return
  }
  func.func @transform_0(%arg0: i32) -> (i32, i32) {
    %c0_i32 = arith.constant 0 : i32
    %c0_i32_0 = arith.constant 0 : i32
    return %arg0, %c0_i32 : i32, i32
  }
  func.func @transform_1(%arg0: i32) -> (i32, i32) {
    %c0_i32 = arith.constant 0 : i32
    %c0_i32_0 = arith.constant 0 : i32
    %c0_i32_1 = arith.constant 0 : i32
    return %c0_i32, %c0_i32_0 : i32, i32
  }
  func.func @transform_2(%arg0: i32) -> (i32, i32) {
    %c0_i32 = arith.constant 0 : i32
    %c0_i32_0 = arith.constant 0 : i32
    %c0_i32_1 = arith.constant 0 : i32
    return %c0_i32, %c0_i32_0 : i32, i32
  }
  func.func @transform_3(%arg0: i32) -> (i32, i32) {
    %c0_i32 = arith.constant 0 : i32
    %c0_i32_0 = arith.constant 0 : i32
    %c0_i32_1 = arith.constant 0 : i32
    return %c0_i32, %c0_i32_0 : i32, i32
  }
  func.func @transform_4(%arg0: i32) -> (i32, i32) {
    %c0_i32 = arith.constant 0 : i32
    %c0_i32_0 = arith.constant 0 : i32
    %c0_i32_1 = arith.constant 0 : i32
    return %c0_i32, %c0_i32_0 : i32, i32
  }
  func.func @transform_5(%arg0: i32) -> (i32, i32) {
    %c0_i32 = arith.constant 0 : i32
    %c0_i32_0 = arith.constant 0 : i32
    return %arg0, %c0_i32 : i32, i32
  }
}

</mosaic_0001>

<llo_original>
// kernel: tpu_custom_call.1
$region0: #{tpu_custom_call.1}
  #allocation0 [shape = 'u32[]', space=smem, size = 0x4, offset = 0x4, fixed_abs, tag = 'smem constant byte address 0x4 - core index']
  #allocation1 [shape = 'u32[72,128]{1,0:T(1,128)}', space=vmem, size = 0x9000, scoped, tag = 'internal scratch']
  %s0 = inlined_call_operand.hbm [shape: f32[2,256], index: 0, kind: input, shape index: {}]
  %s1 = inlined_call_operand.hbm [shape: bf16[256,256], index: 1, kind: input, shape index: {}]
  %s2 = inlined_call_operand.hbm [shape: f32[1,256], index: 2, kind: input, shape index: {}]
  %s3 = inlined_call_operand.hbm [shape: bf16[256,256], index: 3, kind: input, shape index: {}]
  %s4 = inlined_call_operand.vmem [shape: f32[1,256], index: 4, kind: input, shape index: {}]
  %s5 = inlined_call_operand.hbm [shape: f32[2,256], index: 5, kind: output, shape index: {}]
  %s6 = sld [smem:[#allocation0]]
  $region46: #{tpu_custom_call.1} parent=0
    _
  %s8 = ssub.s32 1, %s6
  %s9 = scalar_select 0, %s8, %s6
  $region1: #{tpu_custom_call.1} parent=0
    #allocation2 [shape = 'u8[2048]{0}', space=vmem, size = 0x800, scoped, tag = 'input window, operand 0, single buffered']
    #allocation3 [shape = 's32[1]{0}', space=sflag, size = 0x4, scoped, tag = 'scoped memory for tpu_custom_call.1']
    #allocation4 [shape = 's32[1]{0}', space=sflag, size = 0x4, scoped, tag = 'scoped memory for tpu_custom_call.1']
    #allocation5 [shape = 'u8[131072]{0}', space=vmem, size = 0x20000, scoped, tag = 'input window, operand 1, single buffered']
    #allocation6 [shape = 's32[1]{0}', space=sflag, size = 0x4, scoped, tag = 'scoped memory for tpu_custom_call.1']
    #allocation7 [shape = 'u8[1024]{0}', space=vmem, size = 0x400, scoped, tag = 'input window, operand 2, single buffered']
    #allocation8 [shape = 'u8[131072]{0}', space=vmem, size = 0x20000, scoped, tag = 'input window, operand 3, single buffered']
    #allocation9 [shape = 's32[1]{0}', space=sflag, size = 0x4, scoped, tag = 'scoped memory for tpu_custom_call.1']
    #allocation10 [shape = 'u8[2048]{0}', space=vmem, size = 0x800, scoped, tag = 'output window, operand 0, single buffered']
    %10 = vsyncpa [#allocation3], 0
    %11 = vsyncpa [#allocation6], 0
    %12 = vsyncpa [#allocation9], 0
    %13 = vsyncpa [#allocation4], 0
    // Predicated region
    $region2: #{tpu_custom_call.1} parent=1 // pred_check
      _
    $region3: #{tpu_custom_call.1} parent=1 // pred_check_branch
      %15 = sbr.rel (0) target = $region5
    $region4: #{tpu_custom_call.1} parent=1 // pred_region
      %17 = vsyncadd [#allocation3], 0
      %s19 = sshll.u32 %s0, 4
      %s20 = int_to_ptr.hbm [resolvable:$true] %s19
      %s21 = sshll.u32 [#allocation2], 4
      %s22 = int_to_ptr.vmem [resolvable:$true] %s21
      %24 = dma.hbm_to_vmem [thread:$0]  %s20, 64, %s22, [#allocation3]
    $region5: #{tpu_custom_call.1} parent=1 // pred_fallthru
      _
    // Predicated region
    $region6: #{tpu_custom_call.1} parent=1 // pred_check
      _
    $region7: #{tpu_custom_call.1} parent=1 // pred_check_branch
      %26 = sbr.rel (0) target = $region9
    $region8: #{tpu_custom_call.1} parent=1 // pred_region
      %28 = vsyncadd [#allocation6], 0
      %s29 = sshll.u32 %s1, 4
      %s30 = int_to_ptr.hbm [resolvable:$true] %s29
      %s31 = sshll.u32 [#allocation5], 4
      %s32 = int_to_ptr.vmem [resolvable:$true] %s31
      %37 = dma.hbm_to_vmem [thread:$0]  %s30, 4096, %s32, [#allocation6], 128, 128, 8
    $region9: #{tpu_custom_call.1} parent=1 // pred_fallthru
      _
    // Predicated region
    $region10: #{tpu_custom_call.1} parent=1 // pred_check
      _
    $region11: #{tpu_custom_call.1} parent=1 // pred_check_branch
      %39 = sbr.rel (0) target = $region13
    $region12: #{tpu_custom_call.1} parent=1 // pred_region
      %41 = vsyncadd [#allocation6], 0
      %s43 = sshll.u32 %s2, 4
      %s44 = int_to_ptr.hbm [resolvable:$true] %s43
      %s45 = sshll.u32 [#allocation7], 4
      %s46 = int_to_ptr.vmem [resolvable:$true] %s45
      %48 = dma.hbm_to_vmem [thread:$0]  %s44, 32, %s46, [#allocation6]
    $region13: #{tpu_custom_call.1} parent=1 // pred_fallthru
      _
    // Predicated region
    $region14: #{tpu_custom_call.1} parent=1 // pred_check
      _
    $region15: #{tpu_custom_call.1} parent=1 // pred_check_branch
      %50 = sbr.rel (0) target = $region17
    $region16: #{tpu_custom_call.1} parent=1 // pred_region
      %52 = vsyncadd [#allocation9], 0
      %s53 = sshll.u32 %s3, 4
      %s54 = int_to_ptr.hbm [resolvable:$true] %s53
      %s55 = sshll.u32 [#allocation8], 4
      %s56 = int_to_ptr.vmem [resolvable:$true] %s55
      %61 = dma.hbm_to_vmem [thread:$0]  %s54, 4096, %s56, [#allocation9], 128, 128, 8
    $region17: #{tpu_custom_call.1} parent=1 // pred_fallthru
      _
    // Predicated region
    $region18: #{tpu_custom_call.1} parent=1 // pred_check
      _
    $region19: #{tpu_custom_call.1} parent=1 // pred_check_branch
      %63 = sbr.rel (0) target = $region21
    $region20: #{tpu_custom_call.1} parent=1 // pred_region
      _
    $region21: #{tpu_custom_call.1} parent=1 // pred_fallthru
      _
    // Predicated region
    $region22: #{tpu_custom_call.1} parent=1 // pred_check
      _
    $region23: #{tpu_custom_call.1} parent=1 // pred_check_branch
      %65 = sbr.rel (0) target = $region25
    $region24: #{tpu_custom_call.1} parent=1 // pred_region
      %67 = dma.done [#allocation3], 64
    $region25: #{tpu_custom_call.1} parent=1 // pred_fallthru
      _
    // Predicated region
    $region26: #{tpu_custom_call.1} parent=1 // pred_check
      _
    $region27: #{tpu_custom_call.1} parent=1 // pred_check_branch
      %69 = sbr.rel (0) target = $region29
    $region28: #{tpu_custom_call.1} parent=1 // pred_region
      %71 = dma.done [#allocation6], 4096
    $region29: #{tpu_custom_call.1} parent=1 // pred_fallthru
      _
    // Predicated region
    $region30: #{tpu_custom_call.1} parent=1 // pred_check
      _
    $region31: #{tpu_custom_call.1} parent=1 // pred_check_branch
      %73 = sbr.rel (0) target = $region33
    $region32: #{tpu_custom_call.1} parent=1 // pred_region
      %75 = dma.done [#allocation6], 32
    $region33: #{tpu_custom_call.1} parent=1 // pred_fallthru
      _
    // Predicated region
    $region34: #{tpu_custom_call.1} parent=1 // pred_check
      _
    $region35: #{tpu_custom_call.1} parent=1 // pred_check_branch
      %77 = sbr.rel (0) target = $region37
    $region36: #{tpu_custom_call.1} parent=1 // pred_region
      %79 = dma.done [#allocation9], 4096
    $region37: #{tpu_custom_call.1} parent=1 // pred_fallthru
      _
    %v80 = vld [vmem:[#allocation2] sm:$0xf]
    %82 = vst [vmem:[#allocation1] ss:$4 sm:$0xff] %v80
    %v83 = vld.sshfl [vmem:[#allocation1] sm:$0xff pattern:$0x73625140]
    %v84 = vld.sshfl [vmem:[#allocation1 + $0x8] sm:$0xff pattern:$0x73625140]
    %v87 = vpack.c.bf16 %v83, %v83
    %v88 = vpack.c.bf16 %v84, %v84
    %v89 = vld [vmem:[#allocation5] sm:$0xff]
    %v90 = vld [vmem:[#allocation5 + $0x8] sm:$0xff]
    %v91 = vld [vmem:[#allocation5 + $0x10] sm:$0xff]
    %v92 = vld [vmem:[#allocation5 + $0x18] sm:$0xff]
    %v93 = vld [vmem:[#allocation5 + $0x20] sm:$0xff]
    %v94 = vld [vmem:[#allocation5 + $0x28] sm:$0xff]
    %v95 = vld [vmem:[#allocation5 + $0x30] sm:$0xff]
    %v96 = vld [vmem:[#allocation5 + $0x38] sm:$0xff]
    %v97 = vld [vmem:[#allocation5 + $0x40] sm:$0xff]
    %v98 = vld [vmem:[#allocation5 + $0x48] sm:$0xff]
    %v99 = vld [vmem:[#allocation5 + $0x50] sm:$0xff]
    %v100 = vld [vmem:[#allocation5 + $0x58] sm:$0xff]
    %v101 = vld [vmem:[#allocation5 + $0x60] sm:$0xff]
    %v102 = vld [vmem:[#allocation5 + $0x68] sm:$0xff]
    %v103 = vld [vmem:[#allocation5 + $0x70] sm:$0xff]
    %v104 = vld [vmem:[#allocation5 + $0x78] sm:$0xff]
    %v105 = vld [vmem:[#allocation5 + $0x80] sm:$0xff]
    %v106 = vld [vmem:[#allocation5 + $0x88] sm:$0xff]
    %v107 = vld [vmem:[#allocation5 + $0x90] sm:$0xff]
    %v108 = vld [vmem:[#allocation5 + $0x98] sm:$0xff]
    %v109 = vld [vmem:[#allocation5 + $0xa0] sm:$0xff]
    %v110 = vld [vmem:[#allocation5 + $0xa8] sm:$0xff]
    %v111 = vld [vmem:[#allocation5 + $0xb0] sm:$0xff]
    %v112 = vld [vmem:[#allocation5 + $0xb8] sm:$0xff]
    %v113 = vld [vmem:[#allocation5 + $0xc0] sm:$0xff]
    %v114 = vld [vmem:[#allocation5 + $0xc8] sm:$0xff]
    %v115 = vld [vmem:[#allocation5 + $0xd0] sm:$0xff]
    %v116 = vld [vmem:[#allocation5 + $0xd8] sm:$0xff]
    %v117 = vld [vmem:[#allocation5 + $0xe0] sm:$0xff]
    %v118 = vld [vmem:[#allocation5 + $0xe8] sm:$0xff]
    %v119 = vld [vmem:[#allocation5 + $0xf0] sm:$0xff]
    %v120 = vld [vmem:[#allocation5 + $0xf8] sm:$0xff]
    %v121 = vld [vmem:[#allocation7] sm:$0x3]
    %v123 = vperm.slane %v121, 0
    %v124 = vperm.slane %v121, 1
    %v159 = vunpack.c.l.b16 %v89
    %v160 = vunpack.c.h.b16 %v89
    %v161 = vunpack.c.l.b16 %v90
    %v162 = vunpack.c.h.b16 %v90
    %v163 = vunpack.c.l.b16 %v91
    %v164 = vunpack.c.h.b16 %v91
    %v165 = vunpack.c.l.b16 %v92
    %v166 = vunpack.c.h.b16 %v92
    %v167 = vunpack.c.l.b16 %v93
    %v168 = vunpack.c.h.b16 %v93
    %v169 = vunpack.c.l.b16 %v94
    %v170 = vunpack.c.h.b16 %v94
    %v171 = vunpack.c.l.b16 %v95
    %v172 = vunpack.c.h.b16 %v95
    %v173 = vunpack.c.l.b16 %v96
    %v174 = vunpack.c.h.b16 %v96
    %v175 = vunpack.c.l.b16 %v97
    %v176 = vunpack.c.h.b16 %v97
    %v177 = vunpack.c.l.b16 %v98
    %v178 = vunpack.c.h.b16 %v98
    %v179 = vunpack.c.l.b16 %v99
    %v180 = vunpack.c.h.b16 %v99
    %v181 = vunpack.c.l.b16 %v100
    %v182 = vunpack.c.h.b16 %v100
    %v183 = vunpack.c.l.b16 %v101
    %v184 = vunpack.c.h.b16 %v101
    %v185 = vunpack.c.l.b16 %v102
    %v186 = vunpack.c.h.b16 %v102
    %v187 = vunpack.c.l.b16 %v103
    %v188 = vunpack.c.h.b16 %v103
    %v189 = vunpack.c.l.b16 %v104
    %v190 = vunpack.c.h.b16 %v104
    %v191 = vunpack.c.l.b16 %v105
    %v192 = vunpack.c.h.b16 %v105
    %v193 = vunpack.c.l.b16 %v106
    %v194 = vunpack.c.h.b16 %v106
    %v195 = vunpack.c.l.b16 %v107
    %v196 = vunpack.c.h.b16 %v107
    %v197 = vunpack.c.l.b16 %v108
    %v198 = vunpack.c.h.b16 %v108
    %v199 = vunpack.c.l.b16 %v109
    %v200 = vunpack.c.h.b16 %v109
    %v201 = vunpack.c.l.b16 %v110
    %v202 = vunpack.c.h.b16 %v110
    %v203 = vunpack.c.l.b16 %v111
    %v204 = vunpack.c.h.b16 %v111
    %v205 = vunpack.c.l.b16 %v112
    %v206 = vunpack.c.h.b16 %v112
    %v207 = vunpack.c.l.b16 %v113
    %v208 = vunpack.c.h.b16 %v113
    %v209 = vunpack.c.l.b16 %v114
    %v210 = vunpack.c.h.b16 %v114
    %v211 = vunpack.c.l.b16 %v115
    %v212 = vunpack.c.h.b16 %v115
    %v213 = vunpack.c.l.b16 %v116
    %v214 = vunpack.c.h.b16 %v116
    %v215 = vunpack.c.l.b16 %v117
    %v216 = vunpack.c.h.b16 %v117
    %v217 = vunpack.c.l.b16 %v118
    %v218 = vunpack.c.h.b16 %v118
    %v219 = vunpack.c.l.b16 %v119
    %v220 = vunpack.c.h.b16 %v119
    %v221 = vunpack.c.l.b16 %v120
    %v222 = vunpack.c.h.b16 %v120
    %v223 = vpack.c.b16 %v161, %v159
    %v224 = vpack.c.b16 %v162, %v160
    %v225 = vpack.c.b16 %v165, %v163
    %v226 = vpack.c.b16 %v166, %v164
    %v227 = vpack.c.b16 %v169, %v167
    %v228 = vpack.c.b16 %v170, %v168
    %v229 = vpack.c.b16 %v173, %v171
    %v230 = vpack.c.b16 %v174, %v172
    %v231 = vpack.c.b16 %v177, %v175
    %v232 = vpack.c.b16 %v178, %v176
    %v233 = vpack.c.b16 %v181, %v179
    %v234 = vpack.c.b16 %v182, %v180
    %v235 = vpack.c.b16 %v185, %v183
    %v236 = vpack.c.b16 %v186, %v184
    %v237 = vpack.c.b16 %v189, %v187
    %v238 = vpack.c.b16 %v190, %v188
    %v239 = vpack.c.b16 %v193, %v191
    %v240 = vpack.c.b16 %v194, %v192
    %v241 = vpack.c.b16 %v197, %v195
    %v242 = vpack.c.b16 %v198, %v196
    %v243 = vpack.c.b16 %v201, %v199
    %v244 = vpack.c.b16 %v202, %v200
    %v245 = vpack.c.b16 %v205, %v203
    %v246 = vpack.c.b16 %v206, %v204
    %v247 = vpack.c.b16 %v209, %v207
    %v248 = vpack.c.b16 %v210, %v208
    %v249 = vpack.c.b16 %v213, %v211
    %v250 = vpack.c.b16 %v214, %v212
    %v251 = vpack.c.b16 %v217, %v215
    %v252 = vpack.c.b16 %v218, %v216
    %v253 = vpack.c.b16 %v221, %v219
    %v254 = vpack.c.b16 %v222, %v220
    %287 = vmatpush.bf16.msra.mxu0 %v237
    %288 = vmatpush.bf16.msra.mxu0 %v235
    %289 = vmatpush.bf16.msra.mxu0 %v233
    %290 = vmatpush.bf16.msra.mxu0 %v231
    %291 = vmatpush.bf16.msra.mxu0 %v229
    %292 = vmatpush.bf16.msra.mxu0 %v227
    %293 = vmatpush.bf16.msra.mxu0 %v225
    %294 = vmatpush.bf16.msra.mxu0 %v223
    %295 = vmatmul.bf16.gmra.mxu0 %v87
    %v296 = vpop.f32.mrf.mxu0
    %v297 = vadd.f32 %v123, %v296
    %v298 = vpop.f32.mrf.mxu0
    %299 = vdwg.mxu0
    %300 = vmatpush.bf16.msra.mxu0 %v253
    %301 = vmatpush.bf16.msra.mxu0 %v251
    %302 = vmatpush.bf16.msra.mxu0 %v249
    %303 = vmatpush.bf16.msra.mxu0 %v247
    %304 = vmatpush.bf16.msra.mxu0 %v245
    %305 = vmatpush.bf16.msra.mxu0 %v243
    %306 = vmatpush.bf16.msra.mxu0 %v241
    %307 = vmatpush.bf16.msra.mxu0 %v239
    %308 = vmatmul.bf16.gmra.mxu0 %v88
    %v309 = vpop.f32.mrf.mxu0
    %v310 = vadd.f32 %v297, %v309
    %v311 = vpop.f32.mrf.mxu0
    %312 = vdwg.mxu0
    %313 = vmatpush.bf16.msra.mxu0 %v238
    %314 = vmatpush.bf16.msra.mxu0 %v236
    %315 = vmatpush.bf16.msra.mxu0 %v234
    %316 = vmatpush.bf16.msra.mxu0 %v232
    %317 = vmatpush.bf16.msra.mxu0 %v230
    %318 = vmatpush.bf16.msra.mxu0 %v228
    %319 = vmatpush.bf16.msra.mxu0 %v226
    %320 = vmatpush.bf16.msra.mxu0 %v224
    %321 = vmatmul.bf16.gmra.mxu0 %v87
    %v322 = vpop.f32.mrf.mxu0
    %v323 = vadd.f32 %v124, %v322
    %v324 = vpop.f32.mrf.mxu0
    %325 = vdwg.mxu0
    %326 = vmatpush.bf16.msra.mxu0 %v254
    %327 = vmatpush.bf16.msra.mxu0 %v252
    %328 = vmatpush.bf16.msra.mxu0 %v250
    %329 = vmatpush.bf16.msra.mxu0 %v248
    %330 = vmatpush.bf16.msra.mxu0 %v246
    %331 = vmatpush.bf16.msra.mxu0 %v244
    %332 = vmatpush.bf16.msra.mxu0 %v242
    %333 = vmatpush.bf16.msra.mxu0 %v240
    %334 = vmatmul.bf16.gmra.mxu0 %v88
    %v335 = vpop.f32.mrf.mxu0
    %v336 = vadd.f32 %v323, %v335
    %v337 = vpop.f32.mrf.mxu0
    %338 = vdwg.mxu0
    %v339 = vmax.f32 %v310, 0.0
    %v340 = vmax.f32 %v336, 0.0
    %v341 = vpack.c.bf16 %v339, %v339
    %v342 = vpack.c.bf16 %v340, %v340
    %v343 = vld [vmem:[#allocation8] sm:$0xff]
    %v344 = vld [vmem:[#allocation8 + $0x8] sm:$0xff]
    %v345 = vld [vmem:[#allocation8 + $0x10] sm:$0xff]
    %v346 = vld [vmem:[#allocation8 + $0x18] sm:$0xff]
    %v347 = vld [vmem:[#allocation8 + $0x20] sm:$0xff]
    %v348 = vld [vmem:[#allocation8 + $0x28] sm:$0xff]
    %v349 = vld [vmem:[#allocation8 + $0x30] sm:$0xff]
    %v350 = vld [vmem:[#allocation8 + $0x38] sm:$0xff]
    %v351 = vld [vmem:[#allocation8 + $0x40] sm:$0xff]
    %v352 = vld [vmem:[#allocation8 + $0x48] sm:$0xff]
    %v353 = vld [vmem:[#allocation8 + $0x50] sm:$0xff]
    %v354 = vld [vmem:[#allocation8 + $0x58] sm:$0xff]
    %v355 = vld [vmem:[#allocation8 + $0x60] sm:$0xff]
    %v356 = vld [vmem:[#allocation8 + $0x68] sm:$0xff]
    %v357 = vld [vmem:[#allocation8 + $0x70] sm:$0xff]
    %v358 = vld [vmem:[#allocation8 + $0x78] sm:$0xff]
    %v359 = vld [vmem:[#allocation8 + $0x80] sm:$0xff]
    %v360 = vld [vmem:[#allocation8 + $0x88] sm:$0xff]
    %v361 = vld [vmem:[#allocation8 + $0x90] sm:$0xff]
    %v362 = vld [vmem:[#allocation8 + $0x98] sm:$0xff]
    %v363 = vld [vmem:[#allocation8 + $0xa0] sm:$0xff]
    %v364 = vld [vmem:[#allocation8 + $0xa8] sm:$0xff]
    %v365 = vld [vmem:[#allocation8 + $0xb0] sm:$0xff]
    %v366 = vld [vmem:[#allocation8 + $0xb8] sm:$0xff]
    %v367 = vld [vmem:[#allocation8 + $0xc0] sm:$0xff]
    %v368 = vld [vmem:[#allocation8 + $0xc8] sm:$0xff]
    %v369 = vld [vmem:[#allocation8 + $0xd0] sm:$0xff]
    %v370 = vld [vmem:[#allocation8 + $0xd8] sm:$0xff]
    %v371 = vld [vmem:[#allocation8 + $0xe0] sm:$0xff]
    %v372 = vld [vmem:[#allocation8 + $0xe8] sm:$0xff]
    %v373 = vld [vmem:[#allocation8 + $0xf0] sm:$0xff]
    %v374 = vld [vmem:[#allocation8 + $0xf8] sm:$0xff]
    %v375 = vld [vmem:[%s4] sm:$0x3]
    %v377 = vperm.slane %v375, 0
    %v378 = vperm.slane %v375, 1
    %v413 = vunpack.c.l.b16 %v343
    %v414 = vunpack.c.h.b16 %v343
    %v415 = vunpack.c.l.b16 %v344
    %v416 = vunpack.c.h.b16 %v344
    %v417 = vunpack.c.l.b16 %v345
    %v418 = vunpack.c.h.b16 %v345
    %v419 = vunpack.c.l.b16 %v346
    %v420 = vunpack.c.h.b16 %v346
    %v421 = vunpack.c.l.b16 %v347
    %v422 = vunpack.c.h.b16 %v347
    %v423 = vunpack.c.l.b16 %v348
    %v424 = vunpack.c.h.b16 %v348
    %v425 = vunpack.c.l.b16 %v349
    %v426 = vunpack.c.h.b16 %v349
    %v427 = vunpack.c.l.b16 %v350
    %v428 = vunpack.c.h.b16 %v350
    %v429 = vunpack.c.l.b16 %v351
    %v430 = vunpack.c.h.b16 %v351
    %v431 = vunpack.c.l.b16 %v352
    %v432 = vunpack.c.h.b16 %v352
    %v433 = vunpack.c.l.b16 %v353
    %v434 = vunpack.c.h.b16 %v353
    %v435 = vunpack.c.l.b16 %v354
    %v436 = vunpack.c.h.b16 %v354
    %v437 = vunpack.c.l.b16 %v355
    %v438 = vunpack.c.h.b16 %v355
    %v439 = vunpack.c.l.b16 %v356
    %v440 = vunpack.c.h.b16 %v356
    %v441 = vunpack.c.l.b16 %v357
    %v442 = vunpack.c.h.b16 %v357
    %v443 = vunpack.c.l.b16 %v358
    %v444 = vunpack.c.h.b16 %v358
    %v445 = vunpack.c.l.b16 %v359
    %v446 = vunpack.c.h.b16 %v359
    %v447 = vunpack.c.l.b16 %v360
    %v448 = vunpack.c.h.b16 %v360
    %v449 = vunpack.c.l.b16 %v361
    %v450 = vunpack.c.h.b16 %v361
    %v451 = vunpack.c.l.b16 %v362
    %v452 = vunpack.c.h.b16 %v362
    %v453 = vunpack.c.l.b16 %v363
    %v454 = vunpack.c.h.b16 %v363
    %v455 = vunpack.c.l.b16 %v364
    %v456 = vunpack.c.h.b16 %v364
    %v457 = vunpack.c.l.b16 %v365
    %v458 = vunpack.c.h.b16 %v365
    %v459 = vunpack.c.l.b16 %v366
    %v460 = vunpack.c.h.b16 %v366
    %v461 = vunpack.c.l.b16 %v367
    %v462 = vunpack.c.h.b16 %v367
    %v463 = vunpack.c.l.b16 %v368
    %v464 = vunpack.c.h.b16 %v368
    %v465 = vunpack.c.l.b16 %v369
    %v466 = vunpack.c.h.b16 %v369
    %v467 = vunpack.c.l.b16 %v370
    %v468 = vunpack.c.h.b16 %v370
    %v469 = vunpack.c.l.b16 %v371
    %v470 = vunpack.c.h.b16 %v371
    %v471 = vunpack.c.l.b16 %v372
    %v472 = vunpack.c.h.b16 %v372
    %v473 = vunpack.c.l.b16 %v373
    %v474 = vunpack.c.h.b16 %v373
    %v475 = vunpack.c.l.b16 %v374
    %v476 = vunpack.c.h.b16 %v374
    %v477 = vpack.c.b16 %v415, %v413
    %v478 = vpack.c.b16 %v416, %v414
    %v479 = vpack.c.b16 %v419, %v417
    %v480 = vpack.c.b16 %v420, %v418
    %v481 = vpack.c.b16 %v423, %v421
    %v482 = vpack.c.b16 %v424, %v422
    %v483 = vpack.c.b16 %v427, %v425
    %v484 = vpack.c.b16 %v428, %v426
    %v485 = vpack.c.b16 %v431, %v429
    %v486 = vpack.c.b16 %v432, %v430
    %v487 = vpack.c.b16 %v435, %v433
    %v488 = vpack.c.b16 %v436, %v434
    %v489 = vpack.c.b16 %v439, %v437
    %v490 = vpack.c.b16 %v440, %v438
    %v491 = vpack.c.b16 %v443, %v441
    %v492 = vpack.c.b16 %v444, %v442
    %v493 = vpack.c.b16 %v447, %v445
    %v494 = vpack.c.b16 %v448, %v446
    %v495 = vpack.c.b16 %v451, %v449
    %v496 = vpack.c.b16 %v452, %v450
    %v497 = vpack.c.b16 %v455, %v453
    %v498 = vpack.c.b16 %v456, %v454
    %v499 = vpack.c.b16 %v459, %v457
    %v500 = vpack.c.b16 %v460, %v458
    %v501 = vpack.c.b16 %v463, %v461
    %v502 = vpack.c.b16 %v464, %v462
    %v503 = vpack.c.b16 %v467, %v465
    %v504 = vpack.c.b16 %v468, %v466
    %v505 = vpack.c.b16 %v471, %v469
    %v506 = vpack.c.b16 %v472, %v470
    %v507 = vpack.c.b16 %v475, %v473
    %v508 = vpack.c.b16 %v476, %v474
    %541 = vmatpush.bf16.msra.mxu0 %v491
    %542 = vmatpush.bf16.msra.mxu0 %v489
    %543 = vmatpush.bf16.msra.mxu0 %v487
    %544 = vmatpush.bf16.msra.mxu0 %v485
    %545 = vmatpush.bf16.msra.mxu0 %v483
    %546 = vmatpush.bf16.msra.mxu0 %v481
    %547 = vmatpush.bf16.msra.mxu0 %v479
    %548 = vmatpush.bf16.msra.mxu0 %v477
    %549 = vmatmul.bf16.gmra.mxu0 %v341
    %v550 = vpop.f32.mrf.mxu0
    %v551 = vadd.f32 %v377, %v550
    %v552 = vpop.f32.mrf.mxu0
    %553 = vdwg.mxu0
    %554 = vmatpush.bf16.msra.mxu0 %v507
    %555 = vmatpush.bf16.msra.mxu0 %v505
    %556 = vmatpush.bf16.msra.mxu0 %v503
    %557 = vmatpush.bf16.msra.mxu0 %v501
    %558 = vmatpush.bf16.msra.mxu0 %v499
    %559 = vmatpush.bf16.msra.mxu0 %v497
    %560 = vmatpush.bf16.msra.mxu0 %v495
    %561 = vmatpush.bf16.msra.mxu0 %v493
    %562 = vmatmul.bf16.gmra.mxu0 %v342
    %v563 = vpop.f32.mrf.mxu0
    %v564 = vadd.f32 %v551, %v563
    %v565 = vpop.f32.mrf.mxu0
    %566 = vdwg.mxu0
    %567 = vmatpush.bf16.msra.mxu0 %v492
    %568 = vmatpush.bf16.msra.mxu0 %v490
    %569 = vmatpush.bf16.msra.mxu0 %v488
    %570 = vmatpush.bf16.msra.mxu0 %v486
    %571 = vmatpush.bf16.msra.mxu0 %v484
    %572 = vmatpush.bf16.msra.mxu0 %v482
    %573 = vmatpush.bf16.msra.mxu0 %v480
    %574 = vmatpush.bf16.msra.mxu0 %v478
    %575 = vmatmul.bf16.gmra.mxu0 %v341
    %v576 = vpop.f32.mrf.mxu0
    %v577 = vadd.f32 %v378, %v576
    %v578 = vpop.f32.mrf.mxu0
    %579 = vdwg.mxu0
    %580 = vmatpush.bf16.msra.mxu0 %v508
    %581 = vmatpush.bf16.msra.mxu0 %v506
    %582 = vmatpush.bf16.msra.mxu0 %v504
    %583 = vmatpush.bf16.msra.mxu0 %v502
    %584 = vmatpush.bf16.msra.mxu0 %v500
    %585 = vmatpush.bf16.msra.mxu0 %v498
    %586 = vmatpush.bf16.msra.mxu0 %v496
    %587 = vmatpush.bf16.msra.mxu0 %v494
    %588 = vmatmul.bf16.gmra.mxu0 %v342
    %v589 = vpop.f32.mrf.mxu0
    %v590 = vadd.f32 %v577, %v589
    %v591 = vpop.f32.mrf.mxu0
    %592 = vdwg.mxu0
    %v593 = vmax.f32 %v564, 0.0
    %v594 = vmax.f32 %v590, 0.0
    %595 = vst [vmem:[#allocation1] ss:$4 sm:$0xff] %v80
    %v596 = vld.sshfl [vmem:[#allocation1] sm:$0xff pattern:$0x73625140]
    %v597 = vld.sshfl [vmem:[#allocation1 + $0x8] sm:$0xff pattern:$0x73625140]
    %v600 = vadd.f32 %v593, %v596
    %v601 = vadd.f32 %v594, %v597
    %v604 = vrot.slane %v601, 6
    %vm605 = vcmask 1041408
    %v606 = vsel %vm605, %v600, %v604
    %608 = vst [vmem:[#allocation10] sm:$0xf] %v606
    // Predicated region
    $region38: #{tpu_custom_call.1} parent=1 // pred_check
      _
    $region39: #{tpu_custom_call.1} parent=1 // pred_check_branch
      %610 = sbr.rel (0) target = $region41
    $region40: #{tpu_custom_call.1} parent=1 // pred_region
      %612 = vsyncadd [#allocation4], 0
      %s614 = sshll.u32 [#allocation10], 4
      %s615 = int_to_ptr.vmem [resolvable:$true] %s614
      %s616 = sshll.u32 %s5, 4
      %s617 = int_to_ptr.hbm [resolvable:$true] %s616
      %619 = dma.vmem_to_hbm [thread:$0]  %s615, 64, %s617, [#allocation4]
    $region41: #{tpu_custom_call.1} parent=1 // pred_fallthru
      _
    // Predicated region
    $region42: #{tpu_custom_call.1} parent=1 // pred_check
      _
    $region43: #{tpu_custom_call.1} parent=1 // pred_check_branch
      %621 = sbr.rel (0) target = $region45
    $region44: #{tpu_custom_call.1} parent=1 // pred_region
      %623 = dma.done [#allocation4], 64
    $region45: #{tpu_custom_call.1} parent=1 // pred_fallthru
      _
    %624 = vsyncpa [#allocation3], 1
    %625 = vsyncpa [#allocation6], 1
    %626 = vsyncpa [#allocation9], 1
    %627 = vsyncpa [#allocation4], 1

// kernel: tpu_custom_call.1
$region0: #{tpu_custom_call.1}
  #allocation0 [shape = 'u32[]', space=smem, size = 0x4, offset = 0x4, fixed_abs, tag = 'smem constant byte address 0x4 - core index']
  #allocation1 [shape = 'u32[72,128]{1,0:T(1,128)}', space=vmem, size = 0x9000, scoped, tag = 'internal scratch']
  %s0 = inlined_call_operand.hbm [shape: f32[2,256], index: 0, kind: input, shape index: {}]
  %s1 = inlined_call_operand.hbm [shape: bf16[256,256], index: 1, kind: input, shape index: {}]
  %s2 = inlined_call_operand.hbm [shape: f32[1,256], index: 2, kind: input, shape index: {}]
  %s3 = inlined_call_operand.hbm [shape: bf16[256,256], index: 3, kind: input, shape index: {}]
  %s4 = inlined_call_operand.vmem [shape: f32[1,256], index: 4, kind: input, shape index: {}]
  %s5 = inlined_call_operand.hbm [shape: f32[2,256], index: 5, kind: output, shape index: {}]
  %s6 = sld [smem:[#allocation0]]
  $region46: #{tpu_custom_call.1} parent=0
    _
  %s8 = ssub.s32 1, %s6
  %s9 = scalar_select 0, %s8, %s6
  $region1: #{tpu_custom_call.1} parent=0
    #allocation2 [shape = 'u8[2048]{0}', space=vmem, size = 0x800, scoped, tag = 'input window, operand 0, single buffered']
    #allocation3 [shape = 's32[1]{0}', space=sflag, size = 0x4, scoped, tag = 'scoped memory for tpu_custom_call.1']
    #allocation4 [shape = 's32[1]{0}', space=sflag, size = 0x4, scoped, tag = 'scoped memory for tpu_custom_call.1']
    #allocation5 [shape = 'u8[131072]{0}', space=vmem, size = 0x20000, scoped, tag = 'input window, operand 1, single buffered']
    #allocation6 [shape = 's32[1]{0}', space=sflag, size = 0x4, scoped, tag = 'scoped memory for tpu_custom_call.1']
    #allocation7 [shape = 'u8[1024]{0}', space=vmem, size = 0x400, scoped, tag = 'input window, operand 2, single buffered']
    #allocation8 [shape = 'u8[131072]{0}', space=vmem, size = 0x20000, scoped, tag = 'input window, operand 3, single buffered']
    #allocation9 [shape = 's32[1]{0}', space=sflag, size = 0x4, scoped, tag = 'scoped memory for tpu_custom_call.1']
    #allocation10 [shape = 'u8[2048]{0}', space=vmem, size = 0x800, scoped, tag = 'output window, operand 0, single buffered']
    %10 = vsyncpa [#allocation3], 0
    %11 = vsyncpa [#allocation6], 0
    %12 = vsyncpa [#allocation9], 0
    %13 = vsyncpa [#allocation4], 0
    // Predicated region
    $region2: #{tpu_custom_call.1} parent=1 // pred_check
      _
    $region3: #{tpu_custom_call.1} parent=1 // pred_check_branch
      %15 = sbr.rel (0) target = $region5
    $region4: #{tpu_custom_call.1} parent=1 // pred_region
      %17 = vsyncadd [#allocation3], 0
      %s19 = sshll.u32 %s0, 4
      %s20 = int_to_ptr.hbm [resolvable:$true] %s19
      %s21 = sshll.u32 [#allocation2], 4
      %s22 = int_to_ptr.vmem [resolvable:$true] %s21
      %24 = dma.hbm_to_vmem [thread:$0]  %s20, 64, %s22, [#allocation3]
    $region5: #{tpu_custom_call.1} parent=1 // pred_fallthru
      _
    // Predicated region
    $region6: #{tpu_custom_call.1} parent=1 // pred_check
      _
    $region7: #{tpu_custom_call.1} parent=1 // pred_check_branch
      %26 = sbr.rel (0) target = $region9
    $region8: #{tpu_custom_call.1} parent=1 // pred_region
      %28 = vsyncadd [#allocation6], 0
      %s29 = sshll.u32 %s1, 4
      %s30 = int_to_ptr.hbm [resolvable:$true] %s29
      %s31 = sshll.u32 [#allocation5], 4
      %s32 = int_to_ptr.vmem [resolvable:$true] %s31
      %37 = dma.hbm_to_vmem [thread:$0]  %s30, 4096, %s32, [#allocation6], 128, 128, 8
    $region9: #{tpu_custom_call.1} parent=1 // pred_fallthru
      _
    // Predicated region
    $region10: #{tpu_custom_call.1} parent=1 // pred_check
      _
    $region11: #{tpu_custom_call.1} parent=1 // pred_check_branch
      %39 = sbr.rel (0) target = $region13
    $region12: #{tpu_custom_call.1} parent=1 // pred_region
      %41 = vsyncadd [#allocation6], 0
      %s43 = sshll.u32 %s2, 4
      %s44 = int_to_ptr.hbm [resolvable:$true] %s43
      %s45 = sshll.u32 [#allocation7], 4
      %s46 = int_to_ptr.vmem [resolvable:$true] %s45
      %48 = dma.hbm_to_vmem [thread:$0]  %s44, 32, %s46, [#allocation6]
    $region13: #{tpu_custom_call.1} parent=1 // pred_fallthru
      _
    // Predicated region
    $region14: #{tpu_custom_call.1} parent=1 // pred_check
      _
    $region15: #{tpu_custom_call.1} parent=1 // pred_check_branch
      %50 = sbr.rel (0) target = $region17
    $region16: #{tpu_custom_call.1} parent=1 // pred_region
      %52 = vsyncadd [#allocation9], 0
      %s53 = sshll.u32 %s3, 4
      %s54 = int_to_ptr.hbm [resolvable:$true] %s53
      %s55 = sshll.u32 [#allocation8], 4
      %s56 = int_to_ptr.vmem [resolvable:$true] %s55
      %61 = dma.hbm_to_vmem [thread:$0]  %s54, 4096, %s56, [#allocation9], 128, 128, 8
    $region17: #{tpu_custom_call.1} parent=1 // pred_fallthru
      _
    // Predicated region
    $region18: #{tpu_custom_call.1} parent=1 // pred_check
      _
    $region19: #{tpu_custom_call.1} parent=1 // pred_check_branch
      %63 = sbr.rel (0) target = $region21
    $region20: #{tpu_custom_call.1} parent=1 // pred_region
      _
    $region21: #{tpu_custom_call.1} parent=1 // pred_fallthru
      _
    // Predicated region
    $region22: #{tpu_custom_call.1} parent=1 // pred_check
      _
    $region23: #{tpu_custom_call.1} parent=1 // pred_check_branch
      %65 = sbr.rel (0) target = $region25
    $region24: #{tpu_custom_call.1} parent=1 // pred_region
      %67 = dma.done [#allocation3], 64
    $region25: #{tpu_custom_call.1} parent=1 // pred_fallthru
      _
    // Predicated region
    $region26: #{tpu_custom_call.1} parent=1 // pred_check
      _
    $region27: #{tpu_custom_call.1} parent=1 // pred_check_branch
      %69 = sbr.rel (0) target = $region29
    $region28: #{tpu_custom_call.1} parent=1 // pred_region
      %71 = dma.done [#allocation6], 4096
    $region29: #{tpu_custom_call.1} parent=1 // pred_fallthru
      _
    // Predicated region
    $region30: #{tpu_custom_call.1} parent=1 // pred_check
      _
    $region31: #{tpu_custom_call.1} parent=1 // pred_check_branch
      %73 = sbr.rel (0) target = $region33
    $region32: #{tpu_custom_call.1} parent=1 // pred_region
      %75 = dma.done [#allocation6], 32
    $region33: #{tpu_custom_call.1} parent=1 // pred_fallthru
      _
    // Predicated region
    $region34: #{tpu_custom_call.1} parent=1 // pred_check
      _
    $region35: #{tpu_custom_call.1} parent=1 // pred_check_branch
      %77 = sbr.rel (0) target = $region37
    $region36: #{tpu_custom_call.1} parent=1 // pred_region
      %79 = dma.done [#allocation9], 4096
    $region37: #{tpu_custom_call.1} parent=1 // pred_fallthru
      _
    %v80 = vld [vmem:[#allocation2] sm:$0xf]
    %82 = vst [vmem:[#allocation1] ss:$4 sm:$0xff] %v80
    %v83 = vld.sshfl [vmem:[#allocation1] sm:$0xff pattern:$0x73625140]
    %v84 = vld.sshfl [vmem:[#allocation1 + $0x8] sm:$0xff pattern:$0x73625140]
    %v87 = vpack.c.bf16 %v83, %v83
    %v88 = vpack.c.bf16 %v84, %v84
    %v89 = vld [vmem:[#allocation5] sm:$0xff]
    %v90 = vld [vmem:[#allocation5 + $0x8] sm:$0xff]
    %v91 = vld [vmem:[#allocation5 + $0x10] sm:$0xff]
    %v92 = vld [vmem:[#allocation5 + $0x18] sm:$0xff]
    %v93 = vld [vmem:[#allocation5 + $0x20] sm:$0xff]
    %v94 = vld [vmem:[#allocation5 + $0x28] sm:$0xff]
    %v95 = vld [vmem:[#allocation5 + $0x30] sm:$0xff]
    %v96 = vld [vmem:[#allocation5 + $0x38] sm:$0xff]
    %v97 = vld [vmem:[#allocation5 + $0x40] sm:$0xff]
    %v98 = vld [vmem:[#allocation5 + $0x48] sm:$0xff]
    %v99 = vld [vmem:[#allocation5 + $0x50] sm:$0xff]
    %v100 = vld [vmem:[#allocation5 + $0x58] sm:$0xff]
    %v101 = vld [vmem:[#allocation5 + $0x60] sm:$0xff]
    %v102 = vld [vmem:[#allocation5 + $0x68] sm:$0xff]
    %v103 = vld [vmem:[#allocation5 + $0x70] sm:$0xff]
    %v104 = vld [vmem:[#allocation5 + $0x78] sm:$0xff]
    %v105 = vld [vmem:[#allocation5 + $0x80] sm:$0xff]
    %v106 = vld [vmem:[#allocation5 + $0x88] sm:$0xff]
    %v107 = vld [vmem:[#allocation5 + $0x90] sm:$0xff]
    %v108 = vld [vmem:[#allocation5 + $0x98] sm:$0xff]
    %v109 = vld [vmem:[#allocation5 + $0xa0] sm:$0xff]
    %v110 = vld [vmem:[#allocation5 + $0xa8] sm:$0xff]
    %v111 = vld [vmem:[#allocation5 + $0xb0] sm:$0xff]
    %v112 = vld [vmem:[#allocation5 + $0xb8] sm:$0xff]
    %v113 = vld [vmem:[#allocation5 + $0xc0] sm:$0xff]
    %v114 = vld [vmem:[#allocation5 + $0xc8] sm:$0xff]
    %v115 = vld [vmem:[#allocation5 + $0xd0] sm:$0xff]
    %v116 = vld [vmem:[#allocation5 + $0xd8] sm:$0xff]
    %v117 = vld [vmem:[#allocation5 + $0xe0] sm:$0xff]
    %v118 = vld [vmem:[#allocation5 + $0xe8] sm:$0xff]
    %v119 = vld [vmem:[#allocation5 + $0xf0] sm:$0xff]
    %v120 = vld [vmem:[#allocation5 + $0xf8] sm:$0xff]
    %v121 = vld [vmem:[#allocation7] sm:$0x3]
    %v123 = vperm.slane %v121, 0
    %v124 = vperm.slane %v121, 1
    %v159 = vunpack.c.l.b16 %v89
    %v160 = vunpack.c.h.b16 %v89
    %v161 = vunpack.c.l.b16 %v90
    %v162 = vunpack.c.h.b16 %v90
    %v163 = vunpack.c.l.b16 %v91
    %v164 = vunpack.c.h.b16 %v91
    %v165 = vunpack.c.l.b16 %v92
    %v166 = vunpack.c.h.b16 %v92
    %v167 = vunpack.c.l.b16 %v93
    %v168 = vunpack.c.h.b16 %v93
    %v169 = vunpack.c.l.b16 %v94
    %v170 = vunpack.c.h.b16 %v94
    %v171 = vunpack.c.l.b16 %v95
    %v172 = vunpack.c.h.b16 %v95
    %v173 = vunpack.c.l.b16 %v96
    %v174 = vunpack.c.h.b16 %v96
    %v175 = vunpack.c.l.b16 %v97
    %v176 = vunpack.c.h.b16 %v97
    %v177 = vunpack.c.l.b16 %v98
    %v178 = vunpack.c.h.b16 %v98
    %v179 = vunpack.c.l.b16 %v99
    %v180 = vunpack.c.h.b16 %v99
    %v181 = vunpack.c.l.b16 %v100
    %v182 = vunpack.c.h.b16 %v100
    %v183 = vunpack.c.l.b16 %v101
    %v184 = vunpack.c.h.b16 %v101
    %v185 = vunpack.c.l.b16 %v102
    %v186 = vunpack.c.h.b16 %v102
    %v187 = vunpack.c.l.b16 %v103
    %v188 = vunpack.c.h.b16 %v103
    %v189 = vunpack.c.l.b16 %v104
    %v190 = vunpack.c.h.b16 %v104
    %v191 = vunpack.c.l.b16 %v105
    %v192 = vunpack.c.h.b16 %v105
    %v193 = vunpack.c.l.b16 %v106
    %v194 = vunpack.c.h.b16 %v106
    %v195 = vunpack.c.l.b16 %v107
    %v196 = vunpack.c.h.b16 %v107
    %v197 = vunpack.c.l.b16 %v108
    %v198 = vunpack.c.h.b16 %v108
    %v199 = vunpack.c.l.b16 %v109
    %v200 = vunpack.c.h.b16 %v109
    %v201 = vunpack.c.l.b16 %v110
    %v202 = vunpack.c.h.b16 %v110
    %v203 = vunpack.c.l.b16 %v111
    %v204 = vunpack.c.h.b16 %v111
    %v205 = vunpack.c.l.b16 %v112
    %v206 = vunpack.c.h.b16 %v112
    %v207 = vunpack.c.l.b16 %v113
    %v208 = vunpack.c.h.b16 %v113
    %v209 = vunpack.c.l.b16 %v114
    %v210 = vunpack.c.h.b16 %v114
    %v211 = vunpack.c.l.b16 %v115
    %v212 = vunpack.c.h.b16 %v115
    %v213 = vunpack.c.l.b16 %v116
    %v214 = vunpack.c.h.b16 %v116
    %v215 = vunpack.c.l.b16 %v117
    %v216 = vunpack.c.h.b16 %v117
    %v217 = vunpack.c.l.b16 %v118
    %v218 = vunpack.c.h.b16 %v118
    %v219 = vunpack.c.l.b16 %v119
    %v220 = vunpack.c.h.b16 %v119
    %v221 = vunpack.c.l.b16 %v120
    %v222 = vunpack.c.h.b16 %v120
    %v223 = vpack.c.b16 %v161, %v159
    %v224 = vpack.c.b16 %v162, %v160
    %v225 = vpack.c.b16 %v165, %v163
    %v226 = vpack.c.b16 %v166, %v164
    %v227 = vpack.c.b16 %v169, %v167
    %v228 = vpack.c.b16 %v170, %v168
    %v229 = vpack.c.b16 %v173, %v171
    %v230 = vpack.c.b16 %v174, %v172
    %v231 = vpack.c.b16 %v177, %v175
    %v232 = vpack.c.b16 %v178, %v176
    %v233 = vpack.c.b16 %v181, %v179
    %v234 = vpack.c.b16 %v182, %v180
    %v235 = vpack.c.b16 %v185, %v183
    %v236 = vpack.c.b16 %v186, %v184
    %v237 = vpack.c.b16 %v189, %v187
    %v238 = vpack.c.b16 %v190, %v188
    %v239 = vpack.c.b16 %v193, %v191
    %v240 = vpack.c.b16 %v194, %v192
    %v241 = vpack.c.b16 %v197, %v195
    %v242 = vpack.c.b16 %v198, %v196
    %v243 = vpack.c.b16 %v201, %v199
    %v244 = vpack.c.b16 %v202, %v200
    %v245 = vpack.c.b16 %v205, %v203
    %v246 = vpack.c.b16 %v206, %v204
    %v247 = vpack.c.b16 %v209, %v207
    %v248 = vpack.c.b16 %v210, %v208
    %v249 = vpack.c.b16 %v213, %v211
    %v250 = vpack.c.b16 %v214, %v212
    %v251 = vpack.c.b16 %v217, %v215
    %v252 = vpack.c.b16 %v218, %v216
    %v253 = vpack.c.b16 %v221, %v219
    %v254 = vpack.c.b16 %v222, %v220
    %287 = vmatpush.bf16.msra.mxu0 %v237
    %288 = vmatpush.bf16.msra.mxu0 %v235
    %289 = vmatpush.bf16.msra.mxu0 %v233
    %290 = vmatpush.bf16.msra.mxu0 %v231
    %291 = vmatpush.bf16.msra.mxu0 %v229
    %292 = vmatpush.bf16.msra.mxu0 %v227
    %293 = vmatpush.bf16.msra.mxu0 %v225
    %294 = vmatpush.bf16.msra.mxu0 %v223
    %295 = vmatmul.bf16.gmra.mxu0 %v87
    %v296 = vpop.f32.mrf.mxu0
    %v297 = vadd.f32 %v123, %v296
    %v298 = vpop.f32.mrf.mxu0
    %299 = vdwg.mxu0
    %300 = vmatpush.bf16.msra.mxu0 %v253
    %301 = vmatpush.bf16.msra.mxu0 %v251
    %302 = vmatpush.bf16.msra.mxu0 %v249
    %303 = vmatpush.bf16.msra.mxu0 %v247
    %304 = vmatpush.bf16.msra.mxu0 %v245
    %305 = vmatpush.bf16.msra.mxu0 %v243
    %306 = vmatpush.bf16.msra.mxu0 %v241
    %307 = vmatpush.bf16.msra.mxu0 %v239
    %308 = vmatmul.bf16.gmra.mxu0 %v88
    %v309 = vpop.f32.mrf.mxu0
    %v310 = vadd.f32 %v297, %v309
    %v311 = vpop.f32.mrf.mxu0
    %312 = vdwg.mxu0
    %313 = vmatpush.bf16.msra.mxu0 %v238
    %314 = vmatpush.bf16.msra.mxu0 %v236
    %315 = vmatpush.bf16.msra.mxu0 %v234
    %316 = vmatpush.bf16.msra.mxu0 %v232
    %317 = vmatpush.bf16.msra.mxu0 %v230
    %318 = vmatpush.bf16.msra.mxu0 %v228
    %319 = vmatpush.bf16.msra.mxu0 %v226
    %320 = vmatpush.bf16.msra.mxu0 %v224
    %321 = vmatmul.bf16.gmra.mxu0 %v87
    %v322 = vpop.f32.mrf.mxu0
    %v323 = vadd.f32 %v124, %v322
    %v324 = vpop.f32.mrf.mxu0
    %325 = vdwg.mxu0
    %326 = vmatpush.bf16.msra.mxu0 %v254
    %327 = vmatpush.bf16.msra.mxu0 %v252
    %328 = vmatpush.bf16.msra.mxu0 %v250
    %329 = vmatpush.bf16.msra.mxu0 %v248
    %330 = vmatpush.bf16.msra.mxu0 %v246
    %331 = vmatpush.bf16.msra.mxu0 %v244
    %332 = vmatpush.bf16.msra.mxu0 %v242
    %333 = vmatpush.bf16.msra.mxu0 %v240
    %334 = vmatmul.bf16.gmra.mxu0 %v88
    %v335 = vpop.f32.mrf.mxu0
    %v336 = vadd.f32 %v323, %v335
    %v337 = vpop.f32.mrf.mxu0
    %338 = vdwg.mxu0
    %v339 = vmax.f32 %v310, 0.0
    %v340 = vmax.f32 %v336, 0.0
    %v341 = vpack.c.bf16 %v339, %v339
    %v342 = vpack.c.bf16 %v340, %v340
    %v343 = vld [vmem:[#allocation8] sm:$0xff]
    %v344 = vld [vmem:[#allocation8 + $0x8] sm:$0xff]
    %v345 = vld [vmem:[#allocation8 + $0x10] sm:$0xff]
    %v346 = vld [vmem:[#allocation8 + $0x18] sm:$0xff]
    %v347 = vld [vmem:[#allocation8 + $0x20] sm:$0xff]
    %v348 = vld [vmem:[#allocation8 + $0x28] sm:$0xff]
    %v349 = vld [vmem:[#allocation8 + $0x30] sm:$0xff]
    %v350 = vld [vmem:[#allocation8 + $0x38] sm:$0xff]
    %v351 = vld [vmem:[#allocation8 + $0x40] sm:$0xff]
    %v352 = vld [vmem:[#allocation8 + $0x48] sm:$0xff]
    %v353 = vld [vmem:[#allocation8 + $0x50] sm:$0xff]
    %v354 = vld [vmem:[#allocation8 + $0x58] sm:$0xff]
    %v355 = vld [vmem:[#allocation8 + $0x60] sm:$0xff]
    %v356 = vld [vmem:[#allocation8 + $0x68] sm:$0xff]
    %v357 = vld [vmem:[#allocation8 + $0x70] sm:$0xff]
    %v358 = vld [vmem:[#allocation8 + $0x78] sm:$0xff]
    %v359 = vld [vmem:[#allocation8 + $0x80] sm:$0xff]
    %v360 = vld [vmem:[#allocation8 + $0x88] sm:$0xff]
    %v361 = vld [vmem:[#allocation8 + $0x90] sm:$0xff]
    %v362 = vld [vmem:[#allocation8 + $0x98] sm:$0xff]
    %v363 = vld [vmem:[#allocation8 + $0xa0] sm:$0xff]
    %v364 = vld [vmem:[#allocation8 + $0xa8] sm:$0xff]
    %v365 = vld [vmem:[#allocation8 + $0xb0] sm:$0xff]
    %v366 = vld [vmem:[#allocation8 + $0xb8] sm:$0xff]
    %v367 = vld [vmem:[#allocation8 + $0xc0] sm:$0xff]
    %v368 = vld [vmem:[#allocation8 + $0xc8] sm:$0xff]
    %v369 = vld [vmem:[#allocation8 + $0xd0] sm:$0xff]
    %v370 = vld [vmem:[#allocation8 + $0xd8] sm:$0xff]
    %v371 = vld [vmem:[#allocation8 + $0xe0] sm:$0xff]
    %v372 = vld [vmem:[#allocation8 + $0xe8] sm:$0xff]
    %v373 = vld [vmem:[#allocation8 + $0xf0] sm:$0xff]
    %v374 = vld [vmem:[#allocation8 + $0xf8] sm:$0xff]
    %v375 = vld [vmem:[%s4] sm:$0x3]
    %v377 = vperm.slane %v375, 0
    %v378 = vperm.slane %v375, 1
    %v413 = vunpack.c.l.b16 %v343
    %v414 = vunpack.c.h.b16 %v343
    %v415 = vunpack.c.l.b16 %v344
    %v416 = vunpack.c.h.b16 %v344
    %v417 = vunpack.c.l.b16 %v345
    %v418 = vunpack.c.h.b16 %v345
    %v419 = vunpack.c.l.b16 %v346
    %v420 = vunpack.c.h.b16 %v346
    %v421 = vunpack.c.l.b16 %v347
    %v422 = vunpack.c.h.b16 %v347
    %v423 = vunpack.c.l.b16 %v348
    %v424 = vunpack.c.h.b16 %v348
    %v425 = vunpack.c.l.b16 %v349
    %v426 = vunpack.c.h.b16 %v349
    %v427 = vunpack.c.l.b16 %v350
    %v428 = vunpack.c.h.b16 %v350
    %v429 = vunpack.c.l.b16 %v351
    %v430 = vunpack.c.h.b16 %v351
    %v431 = vunpack.c.l.b16 %v352
    %v432 = vunpack.c.h.b16 %v352
    %v433 = vunpack.c.l.b16 %v353
    %v434 = vunpack.c.h.b16 %v353
    %v435 = vunpack.c.l.b16 %v354
    %v436 = vunpack.c.h.b16 %v354
    %v437 = vunpack.c.l.b16 %v355
    %v438 = vunpack.c.h.b16 %v355
    %v439 = vunpack.c.l.b16 %v356
    %v440 = vunpack.c.h.b16 %v356
    %v441 = vunpack.c.l.b16 %v357
    %v442 = vunpack.c.h.b16 %v357
    %v443 = vunpack.c.l.b16 %v358
    %v444 = vunpack.c.h.b16 %v358
    %v445 = vunpack.c.l.b16 %v359
    %v446 = vunpack.c.h.b16 %v359
    %v447 = vunpack.c.l.b16 %v360
    %v448 = vunpack.c.h.b16 %v360
    %v449 = vunpack.c.l.b16 %v361
    %v450 = vunpack.c.h.b16 %v361
    %v451 = vunpack.c.l.b16 %v362
    %v452 = vunpack.c.h.b16 %v362
    %v453 = vunpack.c.l.b16 %v363
    %v454 = vunpack.c.h.b16 %v363
    %v455 = vunpack.c.l.b16 %v364
    %v456 = vunpack.c.h.b16 %v364
    %v457 = vunpack.c.l.b16 %v365
    %v458 = vunpack.c.h.b16 %v365
    %v459 = vunpack.c.l.b16 %v366
    %v460 = vunpack.c.h.b16 %v366
    %v461 = vunpack.c.l.b16 %v367
    %v462 = vunpack.c.h.b16 %v367
    %v463 = vunpack.c.l.b16 %v368
    %v464 = vunpack.c.h.b16 %v368
    %v465 = vunpack.c.l.b16 %v369
    %v466 = vunpack.c.h.b16 %v369
    %v467 = vunpack.c.l.b16 %v370
    %v468 = vunpack.c.h.b16 %v370
    %v469 = vunpack.c.l.b16 %v371
    %v470 = vunpack.c.h.b16 %v371
    %v471 = vunpack.c.l.b16 %v372
    %v472 = vunpack.c.h.b16 %v372
    %v473 = vunpack.c.l.b16 %v373
    %v474 = vunpack.c.h.b16 %v373
    %v475 = vunpack.c.l.b16 %v374
    %v476 = vunpack.c.h.b16 %v374
    %v477 = vpack.c.b16 %v415, %v413
    %v478 = vpack.c.b16 %v416, %v414
    %v479 = vpack.c.b16 %v419, %v417
    %v480 = vpack.c.b16 %v420, %v418
    %v481 = vpack.c.b16 %v423, %v421
    %v482 = vpack.c.b16 %v424, %v422
    %v483 = vpack.c.b16 %v427, %v425
    %v484 = vpack.c.b16 %v428, %v426
    %v485 = vpack.c.b16 %v431, %v429
    %v486 = vpack.c.b16 %v432, %v430
    %v487 = vpack.c.b16 %v435, %v433
    %v488 = vpack.c.b16 %v436, %v434
    %v489 = vpack.c.b16 %v439, %v437
    %v490 = vpack.c.b16 %v440, %v438
    %v491 = vpack.c.b16 %v443, %v441
    %v492 = vpack.c.b16 %v444, %v442
    %v493 = vpack.c.b16 %v447, %v445
    %v494 = vpack.c.b16 %v448, %v446
    %v495 = vpack.c.b16 %v451, %v449
    %v496 = vpack.c.b16 %v452, %v450
    %v497 = vpack.c.b16 %v455, %v453
    %v498 = vpack.c.b16 %v456, %v454
    %v499 = vpack.c.b16 %v459, %v457
    %v500 = vpack.c.b16 %v460, %v458
    %v501 = vpack.c.b16 %v463, %v461
    %v502 = vpack.c.b16 %v464, %v462
    %v503 = vpack.c.b16 %v467, %v465
    %v504 = vpack.c.b16 %v468, %v466
    %v505 = vpack.c.b16 %v471, %v469
    %v506 = vpack.c.b16 %v472, %v470
    %v507 = vpack.c.b16 %v475, %v473
    %v508 = vpack.c.b16 %v476, %v474
    %541 = vmatpush.bf16.msra.mxu0 %v491
    %542 = vmatpush.bf16.msra.mxu0 %v489
    %543 = vmatpush.bf16.msra.mxu0 %v487
    %544 = vmatpush.bf16.msra.mxu0 %v485
    %545 = vmatpush.bf16.msra.mxu0 %v483
    %546 = vmatpush.bf16.msra.mxu0 %v481
    %547 = vmatpush.bf16.msra.mxu0 %v479
    %548 = vmatpush.bf16.msra.mxu0 %v477
    %549 = vmatmul.bf16.gmra.mxu0 %v341
    %v550 = vpop.f32.mrf.mxu0
    %v551 = vadd.f32 %v377, %v550
    %v552 = vpop.f32.mrf.mxu0
    %553 = vdwg.mxu0
    %554 = vmatpush.bf16.msra.mxu0 %v507
    %555 = vmatpush.bf16.msra.mxu0 %v505
    %556 = vmatpush.bf16.msra.mxu0 %v503
    %557 = vmatpush.bf16.msra.mxu0 %v501
    %558 = vmatpush.bf16.msra.mxu0 %v499
    %559 = vmatpush.bf16.msra.mxu0 %v497
    %560 = vmatpush.bf16.msra.mxu0 %v495
    %561 = vmatpush.bf16.msra.mxu0 %v493
    %562 = vmatmul.bf16.gmra.mxu0 %v342
    %v563 = vpop.f32.mrf.mxu0
    %v564 = vadd.f32 %v551, %v563
    %v565 = vpop.f32.mrf.mxu0
    %566 = vdwg.mxu0
    %567 = vmatpush.bf16.msra.mxu0 %v492
    %568 = vmatpush.bf16.msra.mxu0 %v490
    %569 = vmatpush.bf16.msra.mxu0 %v488
    %570 = vmatpush.bf16.msra.mxu0 %v486
    %571 = vmatpush.bf16.msra.mxu0 %v484
    %572 = vmatpush.bf16.msra.mxu0 %v482
    %573 = vmatpush.bf16.msra.mxu0 %v480
    %574 = vmatpush.bf16.msra.mxu0 %v478
    %575 = vmatmul.bf16.gmra.mxu0 %v341
    %v576 = vpop.f32.mrf.mxu0
    %v577 = vadd.f32 %v378, %v576
    %v578 = vpop.f32.mrf.mxu0
    %579 = vdwg.mxu0
    %580 = vmatpush.bf16.msra.mxu0 %v508
    %581 = vmatpush.bf16.msra.mxu0 %v506
    %582 = vmatpush.bf16.msra.mxu0 %v504
    %583 = vmatpush.bf16.msra.mxu0 %v502
    %584 = vmatpush.bf16.msra.mxu0 %v500
    %585 = vmatpush.bf16.msra.mxu0 %v498
    %586 = vmatpush.bf16.msra.mxu0 %v496
    %587 = vmatpush.bf16.msra.mxu0 %v494
    %588 = vmatmul.bf16.gmra.mxu0 %v342
    %v589 = vpop.f32.mrf.mxu0
    %v590 = vadd.f32 %v577, %v589
    %v591 = vpop.f32.mrf.mxu0
    %592 = vdwg.mxu0
    %v593 = vmax.f32 %v564, 0.0
    %v594 = vmax.f32 %v590, 0.0
    %595 = vst [vmem:[#allocation1] ss:$4 sm:$0xff] %v80
    %v596 = vld.sshfl [vmem:[#allocation1] sm:$0xff pattern:$0x73625140]
    %v597 = vld.sshfl [vmem:[#allocation1 + $0x8] sm:$0xff pattern:$0x73625140]
    %v600 = vadd.f32 %v593, %v596
    %v601 = vadd.f32 %v594, %v597
    %v604 = vrot.slane %v601, 6
    %vm605 = vcmask 1041408
    %v606 = vsel %vm605, %v600, %v604
    %608 = vst [vmem:[#allocation10] sm:$0xf] %v606
    // Predicated region
    $region38: #{tpu_custom_call.1} parent=1 // pred_check
      _
    $region39: #{tpu_custom_call.1} parent=1 // pred_check_branch
      %610 = sbr.rel (0) target = $region41
    $region40: #{tpu_custom_call.1} parent=1 // pred_region
      %612 = vsyncadd [#allocation4], 0
      %s614 = sshll.u32 [#allocation10], 4
      %s615 = int_to_ptr.vmem [resolvable:$true] %s614
      %s616 = sshll.u32 %s5, 4
      %s617 = int_to_ptr.hbm [resolvable:$true] %s616
      %619 = dma.vmem_to_hbm [thread:$0]  %s615, 64, %s617, [#allocation4]
    $region41: #{tpu_custom_call.1} parent=1 // pred_fallthru
      _
    // Predicated region
    $region42: #{tpu_custom_call.1} parent=1 // pred_check
      _
    $region43: #{tpu_custom_call.1} parent=1 // pred_check_branch
      %621 = sbr.rel (0) target = $region45
    $region44: #{tpu_custom_call.1} parent=1 // pred_region
      %623 = dma.done [#allocation4], 64
    $region45: #{tpu_custom_call.1} parent=1 // pred_fallthru
      _
    %624 = vsyncpa [#allocation3], 1
    %625 = vsyncpa [#allocation6], 1
    %626 = vsyncpa [#allocation9], 1
    %627 = vsyncpa [#allocation4], 1

</llo_original>
